<compile_context>
chip_gen: v5e
topology: v5e:2x2
jax: 0.10.0
libtpu: 0.0.40
codegen_flags: <defaults>
</compile_context>

<pallas_src>
import functools

import jax
import jax.numpy as jnp
from jax import lax
from jax.experimental import pallas as pl
from jax.experimental.pallas import tpu as pltpu

_PAD = 8  # sublane padding so per-stripe output blocks stay (8, 128)-aligned


def _contrastive_loss_kernel(im_ref, s_ref, dcol_ref, drow_ref, *refs,
                             margin, max_violation, single_k, tm, tn):
    """One (row-stripe i, col-tile j, K-chunk k) grid step.

    refs layout (assembled by the wrapper):
      outputs : partial_ref [, colmax_out_ref]   (colmax only in max_violation mode)
      scratch : [acc_ref]   [, rowmax_ref]       (acc only when nk > 1)
    """
    idx = 0
    partial_ref = refs[idx]; idx += 1
    colmax_out_ref = None
    if max_violation:
        colmax_out_ref = refs[idx]; idx += 1
    acc_ref = None
    if not single_k:
        acc_ref = refs[idx]; idx += 1
    rowmax_ref = None
    if max_violation:
        rowmax_ref = refs[idx]; idx += 1

    i = pl.program_id(0)
    j = pl.program_id(1)
    k = pl.program_id(2)
    nj = pl.num_programs(1)
    nk = pl.num_programs(2)

    # ---- per-row-stripe init (per-stripe outputs/scratch live for the stripe) ----
    @pl.when((j == 0) & (k == 0))
    def _init_stripe():
        partial_ref[...] = jnp.zeros_like(partial_ref)
        if max_violation:
            rowmax_ref[...] = jnp.zeros_like(rowmax_ref)

    def epilogue(scores):
        d1 = dcol_ref[...].astype(jnp.float32)          # (tm, 1) diag[row]
        d2 = drow_ref[...].astype(jnp.float32)          # (1, tn) diag[col]
        ms = scores + margin                            # shared full-tile add

        def tile_body(mask_diag):
            cost_s = jnp.maximum(ms - d1, 0.0)
            cost_im = jnp.maximum(ms - d2, 0.0)
            if mask_diag:
                # Tile-local identity mask; only built for tiles that straddle
                # the global diagonal (never a [B, B] iota).
                row_ids = i * tm + lax.broadcasted_iota(jnp.int32, (tm, tn), 0)
                col_ids = j * tn + lax.broadcasted_iota(jnp.int32, (tm, tn), 1)
                eye = row_ids == col_ids
                cost_s = jnp.where(eye, 0.0, cost_s)
                cost_im = jnp.where(eye, 0.0, cost_im)
            if max_violation:
                # Running row max across the column tiles of this stripe.
                rowmax_ref[...] = jnp.maximum(
                    rowmax_ref[...], jnp.max(cost_s, axis=1, keepdims=True))
                # Per-stripe column max written straight to its (i, j) output
                # block (rows duplicated to keep the block (8, 128)-aligned).
                cmax = jnp.max(cost_im, axis=0, keepdims=True)      # (1, tn)
                colmax_out_ref[...] = jnp.broadcast_to(cmax, (_PAD, tn))
            else:
                # Single fused reduction in sum mode (hinge costs are >= 0).
                partial_ref[0:1, 0:1] += jnp.sum(cost_s + cost_im, keepdims=True)

        # Only ~1 of nj column tiles per row stripe touches the diagonal; skip
        # the iota/compare/select work everywhere else.
        straddles = (i * tm < (j + 1) * tn) & (j * tn < (i + 1) * tm)

        @pl.when(straddles)
        def _on_diag():
            tile_body(True)

        @pl.when(jnp.logical_not(straddles))
        def _off_diag():
            tile_body(False)

        if max_violation:
            @pl.when(j == nj - 1)
            def _stripe_done():
                partial_ref[0:1, 0:1] += jnp.sum(rowmax_ref[...], keepdims=True)

    # ---- MXU: scores tile = im_tile @ s_tile.T (contract dim 1 of both) ----
    if single_k:
        scores = lax.dot_general(
            im_ref[...], s_ref[...],
            dimension_numbers=(((1,), (1,)), ((), ())),
            preferred_element_type=jnp.float32)
        epilogue(scores)
    else:
        @pl.when(k == 0)
        def _init_scores():
            acc_ref[...] = jnp.zeros_like(acc_ref)

        acc_ref[...] += lax.dot_general(
            im_ref[...], s_ref[...],
            dimension_numbers=(((1,), (1,)), ((), ())),
            preferred_element_type=jnp.float32)

        @pl.when(k == nk - 1)
        def _finalize_tile():
            epilogue(acc_ref[...])


def _pick_block(n, target, align):
    """Largest multiple of `align` that divides n and is <= target, else n (full dim)."""
    t = (min(target, n) // align) * align
    while t >= align:
        if n % t == 0:
            return t
        t -= align
    return n


def contrastive_loss(im, s, *, margin=0.0, max_violation=False,
                     block_m=None, block_n=None, block_k=None,
                     mxu_dtype=None, vmem_budget=48 * 1024 * 1024):
    """Pallas-accelerated ContrastiveLoss.forward (cosine_sim measure)."""
    assert im.ndim == 2 and s.ndim == 2 and im.shape == s.shape
    B, D = im.shape

    # Diagonal of im @ s.T as a row-wise inner product in the native dtype with
    # f32 accumulation; avoids masking/reducing the [B, B] scores and avoids
    # materializing f32 copies of the inputs.
    diag = jnp.einsum("bd,bd->b", im, s, preferred_element_type=jnp.float32)
    diag_col = diag.reshape(B, 1)
    diag_row = diag.reshape(1, B)

    # Optional bf16 MXU path (precision/accuracy decision left to the caller):
    # halves HBM input bytes and uses the fast MXU path on every generation.
    if mxu_dtype is not None:
        im = im.astype(mxu_dtype)
        s = s.astype(mxu_dtype)
    itemsize = jnp.dtype(im.dtype).itemsize

    # ---- tile selection: collapse K (tk = D) when it fits, big MXU-aligned
    # tm/tn, shrink to a conservative VMEM budget (v7x: 64 MiB per TC). -------
    def vmem_need(tm_, tn_, tk_):
        inputs = 2 * 2 * (tm_ + tn_) * tk_ * itemsize      # double-buffered tiles
        work = 6 * tm_ * tn_ * 4                            # scores + hinge costs (f32)
        return inputs + work

    tm_t, tn_t, tk_t = 512, 512, D
    while vmem_need(tm_t, tn_t, tk_t) > vmem_budget and tk_t > 512:
        tk_t = max(512, tk_t // 2)
    while vmem_need(tm_t, tn_t, tk_t) > vmem_budget and tm_t > 128:
        tm_t //= 2
        tn_t //= 2

    tm = block_m if block_m is not None else _pick_block(B, tm_t, 128)
    tn = block_n if block_n is not None else _pick_block(B, tn_t, 128)
    tk = block_k if block_k is not None else _pick_block(D, tk_t, 128)
    assert B % tm == 0 and B % tn == 0 and D % tk == 0, (B, D, tm, tn, tk)
    ni, nj, nk = B // tm, B // tn, D // tk
    single_k = nk == 1

    kernel = functools.partial(
        _contrastive_loss_kernel,
        margin=float(margin), max_violation=bool(max_violation),
        single_k=single_k, tm=tm, tn=tn)

    # Per-row-stripe partial outputs: nothing is shared across the i axis, so it
    # can be marked "parallel" (megacore split on v7x).  Final reductions over
    # these tiny arrays happen in the wrapper.
    out_shapes = [jax.ShapeDtypeStruct((ni * _PAD, 128), jnp.float32)]
    out_specs = [pl.BlockSpec((_PAD, 128), lambda i, j, k: (i, 0))]
    if max_violation:
        out_shapes.append(jax.ShapeDtypeStruct((ni * _PAD, B), jnp.float32))
        out_specs.append(pl.BlockSpec((_PAD, tn), lambda i, j, k: (i, j)))

    scratch_shapes = []
    if not single_k:
        scratch_shapes.append(pltpu.VMEM((tm, tn), jnp.float32))   # K accumulator
    if max_violation:
        scratch_shapes.append(pltpu.VMEM((tm, 1), jnp.float32))    # running row max

    out_bytes = ni * _PAD * 128 * 4 + (ni * _PAD * B * 4 if max_violation else 0)
    cost = pl.CostEstimate(
        flops=2 * B * B * D,
        transcendentals=0,
        bytes_accessed=int(B * D * itemsize * (ni + nj)     # im / s re-reads
                           + 4 * B * (ni + nj)               # diag tiles
                           + out_bytes))

    vmem_limit = int(min(max(vmem_need(tm, tn, tk) + (4 << 20), 32 << 20), 96 << 20))

    outs = pl.pallas_call(
        kernel,
        out_shape=tuple(out_shapes),
        grid_spec=pltpu.PrefetchScalarGridSpec(
            num_scalar_prefetch=0,
            grid=(ni, nj, nk),
            in_specs=[
                pl.BlockSpec((tm, tk), lambda i, j, k: (i, k)),   # im row tile
                pl.BlockSpec((tn, tk), lambda i, j, k: (j, k)),   # s rows -> score cols
                pl.BlockSpec((tm, 1), lambda i, j, k: (i, 0)),    # diag as column
                pl.BlockSpec((1, tn), lambda i, j, k: (0, j)),    # diag as row
            ],
            out_specs=tuple(out_specs),
            scratch_shapes=scratch_shapes,
        ),
        # j, k feed per-stripe accumulators -> "arbitrary"; i is independent
        # across stripes -> "parallel".
        compiler_params=pltpu.CompilerParams(
            dimension_semantics=("parallel", "arbitrary", "arbitrary"),
            vmem_limit_bytes=vmem_limit),
        cost_estimate=cost,
    )(im, s, diag_col, diag_row)

    if max_violation:
        partial, colmax = outs
        return jnp.sum(partial) + jnp.sum(jnp.max(colmax, axis=0))
    (partial,) = outs
    return jnp.sum(partial)


def _reference_loss(im, s, margin=0.0, max_violation=False):
    """Pure-JAX reference mirroring the PyTorch module."""
    scores = im.astype(jnp.float32) @ s.astype(jnp.float32).T
    diag = jnp.diag(scores).reshape(-1, 1)
    cost_s = jnp.maximum(margin + scores - diag, 0.0)
    cost_im = jnp.maximum(margin + scores - diag.T, 0.0)
    eye = jnp.eye(scores.shape[0], dtype=bool)
    cost_s = jnp.where(eye, 0.0, cost_s)
    cost_im = jnp.where(eye, 0.0, cost_im)
    if max_violation:
        cost_s = cost_s.max(axis=1)
        cost_im = cost_im.max(axis=0)
    return cost_s.sum() + cost_im.sum()


if __name__ == "__main__":
    # ContrastiveLoss has no learnable parameters; only (margin, max_violation).
    key = jax.random.PRNGKey(0)
    k_im, k_s = jax.random.split(key)

    # Small single-tile case (module default config: margin=0, cosine_sim, sum).
    B, D = 8, 32
    im = jax.random.normal(k_im, (B, D), dtype=jnp.float32)
    s = jax.random.normal(k_s, (B, D), dtype=jnp.float32)

    loss = jax.block_until_ready(contrastive_loss(im, s, margin=0.0, max_violation=False))
    ref = _reference_loss(im, s, 0.0, False)
    assert jnp.allclose(loss, ref, rtol=5e-3, atol=1e-2), (loss, ref)

    loss_mv = jax.block_until_ready(contrastive_loss(im, s, margin=0.2, max_violation=True))
    ref_mv = _reference_loss(im, s, 0.2, True)
    assert jnp.allclose(loss_mv, ref_mv, rtol=5e-3, atol=1e-2), (loss_mv, ref_mv)

    # Larger case, default tiles: exercises the collapsed-K (nk == 1) fast path.
    B2, D2 = 256, 512
    k_im2, k_s2 = jax.random.split(jax.random.PRNGKey(1))
    im2 = jax.random.normal(k_im2, (B2, D2), dtype=jnp.float32)
    s2 = jax.random.normal(k_s2, (B2, D2), dtype=jnp.float32)

    loss2a = jax.block_until_ready(contrastive_loss(im2, s2, margin=0.1, max_violation=False))
    ref2 = _reference_loss(im2, s2, 0.1, False)
    assert jnp.allclose(loss2a, ref2, rtol=5e-3, atol=1e-2), (loss2a, ref2)

    # Multi-tile case with explicit blocks: exercises the (i, j, k) grid, the K
    # accumulator, the diagonal-straddle gating and cross-tile row/col maxima.
    loss2 = jax.block_until_ready(
        contrastive_loss(im2, s2, margin=0.1, max_violation=False,
                         block_m=128, block_n=128, block_k=256))
    assert jnp.allclose(loss2, ref2, rtol=5e-3, atol=1e-2), (loss2, ref2)

    loss2_mv = jax.block_until_ready(
        contrastive_loss(im2, s2, margin=0.2, max_violation=True,
                         block_m=128, block_n=128, block_k=256))
    ref2_mv = _reference_loss(im2, s2, 0.2, True)
    assert jnp.allclose(loss2_mv, ref2_mv, rtol=5e-3, atol=1e-2), (loss2_mv, ref2_mv)

    print("KERNEL_OK")
</pallas_src>

<mosaic_0001>
module attributes {stable_mosaic.version = 11 : i64} {
  func.func @_contrastive_loss_kernel(%arg0: i32, %arg1: i32, %arg2: i32, %arg3: memref<8x32xf32, #tpu.memory_space<vmem>>, %arg4: memref<8x32xf32, #tpu.memory_space<vmem>>, %arg5: memref<8x1xf32, #tpu.memory_space<vmem>>, %arg6: memref<1x8xf32, #tpu.memory_space<vmem>>, %arg7: memref<8x128xf32, #tpu.memory_space<vmem>>) attributes {dimension_semantics = [#tpu.dimension_semantics<parallel>, #tpu.dimension_semantics<arbitrary>, #tpu.dimension_semantics<arbitrary>], iteration_bounds = array<i64: 1, 1, 1>, scalar_prefetch = 0 : i64, scratch_operands = 0 : i64, tpu.core_type = #tpu.core_type<tc>, window_params = [{transform_indices = @transform_0, window_bounds = array<i64: 8, 32>}, {transform_indices = @transform_1, window_bounds = array<i64: 8, 32>}, {transform_indices = @transform_2, window_bounds = array<i64: 8, 1>}, {transform_indices = @transform_3, window_bounds = array<i64: 1, 8>}, {transform_indices = @transform_4, window_bounds = array<i64: 8, 128>}]} {
    %c0_i32 = arith.constant 0 : i32
    %0 = arith.cmpi eq, %arg1, %c0_i32 : i32
    %c0_i32_0 = arith.constant 0 : i32
    %1 = arith.cmpi eq, %arg2, %c0_i32_0 : i32
    %2 = arith.andi %0, %1 : i1
    %3 = arith.extui %2 : i1 to i32
    %c0_i32_1 = arith.constant 0 : i32
    %4 = arith.cmpi ne, %3, %c0_i32_1 : i32
    scf.if %4 {
      %cst_16 = arith.constant 0.000000e+00 : f32
      %26 = vector.broadcast %cst_16 : f32 to vector<8x128xf32>
      %c0_17 = arith.constant 0 : index
      %c0_18 = arith.constant 0 : index
      %27 = vector.load %arg7[%c0_17, %c0_18] : memref<8x128xf32, #tpu.memory_space<vmem>>, vector<8x128xf32>
      tpu.vector_store %arg7[%c0_17, %c0_18], %26 {strides = array<i32>} : memref<8x128xf32, #tpu.memory_space<vmem>>, vector<8x128xf32>,
    } else {
    }
    %c0 = arith.constant 0 : index
    %c0_2 = arith.constant 0 : index
    %5 = vector.load %arg3[%c0, %c0_2] : memref<8x32xf32, #tpu.memory_space<vmem>>, vector<8x32xf32>
    %c0_3 = arith.constant 0 : index
    %c0_4 = arith.constant 0 : index
    %6 = vector.load %arg4[%c0_3, %c0_4] : memref<8x32xf32, #tpu.memory_space<vmem>>, vector<8x32xf32>
    %cst = arith.constant dense<0.000000e+00> : vector<8x8xf32>
    %7 = tpu.matmul %5, %6, %cst {dimension_numbers = #tpu.dot_dimension_numbers<[1], [1], [0], [0], [0, 0, 1, 0], [], []>} : vector<8x32xf32>, vector<8x32xf32>, vector<8x8xf32> -> vector<8x8xf32>
    %c0_5 = arith.constant 0 : index
    %c0_6 = arith.constant 0 : index
    %8 = vector.load %arg5[%c0_5, %c0_6] : memref<8x1xf32, #tpu.memory_space<vmem>>, vector<8x1xf32>
    %c0_7 = arith.constant 0 : index
    %c0_8 = arith.constant 0 : index
    %9 = vector.load %arg6[%c0_7, %c0_8] : memref<1x8xf32, #tpu.memory_space<vmem>>, vector<1x8xf32>
    %cst_9 = arith.constant 0.000000e+00 : f32
    %10 = vector.broadcast %cst_9 : f32 to vector<8x8xf32>
    %11 = arith.addf %7, %10 : vector<8x8xf32>
    %c8_i32 = arith.constant 8 : i32
    %12 = arith.muli %arg0, %c8_i32 : i32
    %c1_i32 = arith.constant 1 : i32
    %13 = arith.addi %arg1, %c1_i32 : i32
    %c8_i32_10 = arith.constant 8 : i32
    %14 = arith.muli %13, %c8_i32_10 : i32
    %15 = arith.cmpi slt, %12, %14 : i32
    %c8_i32_11 = arith.constant 8 : i32
    %16 = arith.muli %arg1, %c8_i32_11 : i32
    %c1_i32_12 = arith.constant 1 : i32
    %17 = arith.addi %arg0, %c1_i32_12 : i32
    %c8_i32_13 = arith.constant 8 : i32
    %18 = arith.muli %17, %c8_i32_13 : i32
    %19 = arith.cmpi slt, %16, %18 : i32
    %20 = arith.andi %15, %19 : i1
    %21 = arith.extui %20 : i1 to i32
    %c0_i32_14 = arith.constant 0 : i32
    %22 = arith.cmpi ne, %21, %c0_i32_14 : i32
    scf.if %22 {
      %26 = vector.broadcast %8 : vector<8x1xf32> to vector<8x8xf32>
      %27 = arith.subf %11, %26 : vector<8x8xf32>
      %cst_16 = arith.constant 0.000000e+00 : f32
      %28 = vector.broadcast %cst_16 : f32 to vector<8x8xf32>
      %29 = arith.maximumf %27, %28 : vector<8x8xf32>
      %30 = vector.broadcast %9 : vector<1x8xf32> to vector<8x8xf32>
      %31 = arith.subf %11, %30 : vector<8x8xf32>
      %cst_17 = arith.constant 0.000000e+00 : f32
      %32 = vector.broadcast %cst_17 : f32 to vector<8x8xf32>
      %33 = arith.maximumf %31, %32 : vector<8x8xf32>
      %c8_i32_18 = arith.constant 8 : i32
      %34 = arith.muli %arg0, %c8_i32_18 : i32
      %35 = tpu.iota {dimensions = array<i32: 0>} : vector<8x8xi32>
      %36 = vector.broadcast %34 : i32 to vector<8x8xi32>
      %37 = arith.addi %36, %35 : vector<8x8xi32>
      %c8_i32_19 = arith.constant 8 : i32
      %38 = arith.muli %arg1, %c8_i32_19 : i32
      %39 = tpu.iota {dimensions = array<i32: 1>} : vector<8x8xi32>
      %40 = vector.broadcast %38 : i32 to vector<8x8xi32>
      %41 = arith.addi %40, %39 : vector<8x8xi32>
      %42 = arith.cmpi eq, %37, %41 : vector<8x8xi32>
      %cst_20 = arith.constant 0.000000e+00 : f32
      %43 = vector.broadcast %cst_20 : f32 to vector<8x8xf32>
      %44 = arith.select %42, %43, %29 : vector<8x8xi1>, vector<8x8xf32>
      %cst_21 = arith.constant 0.000000e+00 : f32
      %45 = vector.broadcast %cst_21 : f32 to vector<8x8xf32>
      %46 = arith.select %42, %45, %33 : vector<8x8xi1>, vector<8x8xf32>
      %c0_22 = arith.constant 0 : index
      %c0_23 = arith.constant 0 : index
      %47 = vector.load %arg7[%c0_22, %c0_23] : memref<8x128xf32, #tpu.memory_space<vmem>>, vector<1x1xf32>
      %48 = arith.addf %44, %46 : vector<8x8xf32>
      %49 = vector.shape_cast %48 : vector<8x8xf32> to vector<1x8x8xf32>
      %cst_24 = arith.constant dense<0.000000e+00> : vector<1xf32>
      %50 = vector.multi_reduction <add>, %49, %cst_24 [1, 2] : vector<1x8x8xf32> to vector<1xf32>
      %51 = vector.shape_cast %50 : vector<1xf32> to vector<1x1x1xf32>
      %52 = vector.extract %51[0, 0, 0] : f32 from vector<1x1x1xf32>
      %53 = vector.broadcast %52 : f32 to vector<1x1xf32>
      %54 = arith.addf %47, %53 : vector<1x1xf32>
      %c0_25 = arith.constant 0 : index
      %c0_26 = arith.constant 0 : index
      %55 = vector.load %arg7[%c0_25, %c0_26] : memref<8x128xf32, #tpu.memory_space<vmem>>, vector<1x1xf32>
      tpu.vector_store %arg7[%c0_25, %c0_26], %54 {strides = array<i32>} : memref<8x128xf32, #tpu.memory_space<vmem>>, vector<1x1xf32>,
    } else {
    }
    %true = arith.constant true
    %23 = arith.xori %20, %true : i1
    %24 = arith.extui %23 : i1 to i32
    %c0_i32_15 = arith.constant 0 : i32
    %25 = arith.cmpi ne, %24, %c0_i32_15 : i32
    scf.if %25 {
      %26 = vector.broadcast %8 : vector<8x1xf32> to vector<8x8xf32>
      %27 = arith.subf %11, %26 : vector<8x8xf32>
      %cst_16 = arith.constant 0.000000e+00 : f32
      %28 = vector.broadcast %cst_16 : f32 to vector<8x8xf32>
      %29 = arith.maximumf %27, %28 : vector<8x8xf32>
      %30 = vector.broadcast %9 : vector<1x8xf32> to vector<8x8xf32>
      %31 = arith.subf %11, %30 : vector<8x8xf32>
      %cst_17 = arith.constant 0.000000e+00 : f32
      %32 = vector.broadcast %cst_17 : f32 to vector<8x8xf32>
      %33 = arith.maximumf %31, %32 : vector<8x8xf32>
      %c0_18 = arith.constant 0 : index
      %c0_19 = arith.constant 0 : index
      %34 = vector.load %arg7[%c0_18, %c0_19] : memref<8x128xf32, #tpu.memory_space<vmem>>, vector<1x1xf32>
      %35 = arith.addf %29, %33 : vector<8x8xf32>
      %36 = vector.shape_cast %35 : vector<8x8xf32> to vector<1x8x8xf32>
      %cst_20 = arith.constant dense<0.000000e+00> : vector<1xf32>
      %37 = vector.multi_reduction <add>, %36, %cst_20 [1, 2] : vector<1x8x8xf32> to vector<1xf32>
      %38 = vector.shape_cast %37 : vector<1xf32> to vector<1x1x1xf32>
      %39 = vector.extract %38[0, 0, 0] : f32 from vector<1x1x1xf32>
      %40 = vector.broadcast %39 : f32 to vector<1x1xf32>
      %41 = arith.addf %34, %40 : vector<1x1xf32>
      %c0_21 = arith.constant 0 : index
      %c0_22 = arith.constant 0 : index
      %42 = vector.load %arg7[%c0_21, %c0_22] : memref<8x128xf32, #tpu.memory_space<vmem>>, vector<1x1xf32>
      tpu.vector_store %arg7[%c0_21, %c0_22], %41 {strides = array<i32>} : memref<8x128xf32, #tpu.memory_space<vmem>>, vector<1x1xf32>,
    } else {
    }
    return
  }
  func.func @transform_0(%arg0: i32, %arg1: i32, %arg2: i32) -> (i32, i32) {
    %c0_i32 = arith.constant 0 : i32
    return %arg0, %arg2 : i32, i32
  }
  func.func @transform_1(%arg0: i32, %arg1: i32, %arg2: i32) -> (i32, i32) {
    %c0_i32 = arith.constant 0 : i32
    return %arg1, %arg2 : i32, i32
  }
  func.func @transform_2(%arg0: i32, %arg1: i32, %arg2: i32) -> (i32, i32) {
    %c0_i32 = arith.constant 0 : i32
    %c0_i32_0 = arith.constant 0 : i32
    return %arg0, %c0_i32 : i32, i32
  }
  func.func @transform_3(%arg0: i32, %arg1: i32, %arg2: i32) -> (i32, i32) {
    %c0_i32 = arith.constant 0 : i32
    %c0_i32_0 = arith.constant 0 : i32
    return %c0_i32, %arg1 : i32, i32
  }
  func.func @transform_4(%arg0: i32, %arg1: i32, %arg2: i32) -> (i32, i32) {
    %c0_i32 = arith.constant 0 : i32
    %c0_i32_0 = arith.constant 0 : i32
    return %arg0, %c0_i32 : i32, i32
  }
}

</mosaic_0001>

<llo_original>
// kernel: tpu_custom_call.1
$region0: #{tpu_custom_call.1}
  #allocation0 [shape = 'u32[]', space=smem, size = 0x4, offset = 0x4, fixed_abs, tag = 'smem constant byte address 0x4 - core index']
  #allocation1 [shape = 'u32[72,128]{1,0:T(1,128)}', space=vmem, size = 0x9000, scoped, tag = 'internal scratch']
  %s0 = inlined_call_operand.vmem [shape: f32[8,32], index: 0, kind: input, shape index: {}]
  %s1 = inlined_call_operand.hbm [shape: f32[8,32], index: 1, kind: input, shape index: {}]
  %s2 = inlined_call_operand.vmem [shape: f32[8,1], index: 2, kind: input, shape index: {}]
  %s3 = inlined_call_operand.vmem [shape: f32[1,8], index: 3, kind: input, shape index: {}]
  %s4 = inlined_call_operand.hbm [shape: f32[8,128], index: 4, kind: output, shape index: {}]
  %s5 = sld [smem:[#allocation0]]
  $region42: #{tpu_custom_call.1} parent=0
    _
  %s7 = ssub.s32 1, %s5
  %s8 = scalar_select 0, %s7, %s5
  $region1: #{tpu_custom_call.1} parent=0
    #allocation2 [shape = 'u8[4096]{0}', space=vmem, size = 0x1000, scoped, tag = 'input window, operand 1, single buffered']
    #allocation3 [shape = 's32[1]{0}', space=sflag, size = 0x4, scoped, tag = 'scoped memory for tpu_custom_call.1']
    #allocation4 [shape = 's32[1]{0}', space=sflag, size = 0x4, scoped, tag = 'scoped memory for tpu_custom_call.1']
    #allocation5 [shape = 'u8[4096]{0}', space=vmem, size = 0x1000, scoped, tag = 'output window, operand 0, single buffered']
    %9 = vsyncpa [#allocation3], 0
    %10 = vsyncpa [#allocation4], 0
    // Predicated region
    $region2: #{tpu_custom_call.1} parent=1 // pred_check
      _
    $region3: #{tpu_custom_call.1} parent=1 // pred_check_branch
      %12 = sbr.rel (0) target = $region5
    $region4: #{tpu_custom_call.1} parent=1 // pred_region
      _
    $region5: #{tpu_custom_call.1} parent=1 // pred_fallthru
      _
    // Predicated region
    $region6: #{tpu_custom_call.1} parent=1 // pred_check
      _
    $region7: #{tpu_custom_call.1} parent=1 // pred_check_branch
      %14 = sbr.rel (0) target = $region9
    $region8: #{tpu_custom_call.1} parent=1 // pred_region
      %16 = vsyncadd [#allocation3], 0
      %s18 = sshll.u32 %s1, 4
      %s19 = int_to_ptr.hbm [resolvable:$true] %s18
      %s20 = sshll.u32 [#allocation2], 4
      %s21 = int_to_ptr.vmem [resolvable:$true] %s20
      %23 = dma.hbm_to_vmem [thread:$0]  %s19, 128, %s21, [#allocation3]
    $region9: #{tpu_custom_call.1} parent=1 // pred_fallthru
      _
    // Predicated region
    $region10: #{tpu_custom_call.1} parent=1 // pred_check
      _
    $region11: #{tpu_custom_call.1} parent=1 // pred_check_branch
      %25 = sbr.rel (0) target = $region13
    $region12: #{tpu_custom_call.1} parent=1 // pred_region
      _
    $region13: #{tpu_custom_call.1} parent=1 // pred_fallthru
      _
    // Predicated region
    $region14: #{tpu_custom_call.1} parent=1 // pred_check
      _
    $region15: #{tpu_custom_call.1} parent=1 // pred_check_branch
      %27 = sbr.rel (0) target = $region17
    $region16: #{tpu_custom_call.1} parent=1 // pred_region
      _
    $region17: #{tpu_custom_call.1} parent=1 // pred_fallthru
      _
    // Predicated region
    $region18: #{tpu_custom_call.1} parent=1 // pred_check
      _
    $region19: #{tpu_custom_call.1} parent=1 // pred_check_branch
      %29 = sbr.rel (0) target = $region21
    $region20: #{tpu_custom_call.1} parent=1 // pred_region
      %31 = dma.done [#allocation3], 128
    $region21: #{tpu_custom_call.1} parent=1 // pred_fallthru
      _
    %p32 = scmp.eq.s32.totalorder 0, 0
    %p33 = scmp.eq.s32.totalorder 0, 0
    %p34 = pnand %p32, %p33
    %p35 = pneg %p34
    // Predicated region
    $region22: #{tpu_custom_call.1} parent=1 // pred_check
      _
    $region23: #{tpu_custom_call.1} parent=1 // pred_check_branch
      %37 = sbr.rel (%p34) target = $region25
    $region24: #{tpu_custom_call.1} parent=1 // pred_region
      %38 = vst [vmem:[#allocation5] sm:$0xff] 0.0
    $region25: #{tpu_custom_call.1} parent=1 // pred_fallthru
      _
    %v39 = vld [vmem:[%s0] sm:$0xff]
    %v40 = vld [vmem:[#allocation2] sm:$0xff]
    %v41 = vld [vmem:[%s2] sm:$0xff]
    %v42 = vld [vmem:[%s3] sm:$0x1]
    %vm43 = vcmask 261120
    %v45 = vsel %vm43, %v39, 0
    %v48 = vsel %vm43, %v40, 0
    %50 = vmatpush.xpose.msra.mxu0 0.0
    %51 = vmatpush.xpose.msra.mxu0 0.0
    %52 = vmatpush.xpose.msra.mxu0 0.0
    %53 = vmatpush.xpose.msra.mxu0 0.0
    %54 = vmatpush.xpose.msra.mxu0 0.0
    %55 = vmatpush.xpose.msra.mxu0 0.0
    %56 = vmatpush.xpose.msra.mxu0 0.0
    %57 = vmatpush.xpose.msra.mxu0 0.0
    %58 = vmatpush.xpose.msra.mxu0 0.0
    %59 = vmatpush.xpose.msra.mxu0 0.0
    %60 = vmatpush.xpose.msra.mxu0 0.0
    %61 = vmatpush.xpose.msra.mxu0 0.0
    %62 = vmatpush.xpose.msra.mxu0 0.0
    %63 = vmatpush.xpose.msra.mxu0 0.0
    %64 = vmatpush.xpose.msra.mxu0 0.0
    %65 = vmatpush.xpose.msra.mxu0 %v48
    %66 = vmatmul.f32.gmra.mxu0 %v45
    %v67 = vpop.f32.mrf.mxu0
    %v68 = vadd.f32 0.0, %v67
    %69 = vdwg.mxu0
    %s70 = smul.u32 0, 8
    %s71 = sadd.s32 0, 1
    %s72 = smul.u32 %s71, 8
    %p73 = scmp.lt.s32.totalorder %s70, %s72
    %s74 = smul.u32 0, 8
    %s75 = sadd.s32 0, 1
    %s76 = smul.u32 %s75, 8
    %p77 = scmp.lt.s32.totalorder %s74, %s76
    %p78 = pnand %p73, %p77
    %p79 = pneg %p78
    // Predicated region
    $region26: #{tpu_custom_call.1} parent=1 // pred_check
      _
    $region27: #{tpu_custom_call.1} parent=1 // pred_check_branch
      %81 = sbr.rel (%p78) target = $region29
    $region28: #{tpu_custom_call.1} parent=1 // pred_region
      %83 = vset.pattern.permute.xlu0 0
      %84 = vperm.xlu0 %83, %v41
      %v85 = vpop.permute.xlu0 %84
      %v87 = vsub.f32 %v68, %v85
      %v88 = vmax.f32 %v87, 0.0
      %v90 = vperm.slane %v42, 0
      %v92 = vsub.f32 %v68, %v90
      %v93 = vmax.f32 %v92, 0.0
      %v94 = vlaneseq
      %v95 = vshrl.u32 %v94, 7
      %v96 = vstv %s70
      %v97 = vadd.s32 %v96, %v95
      %v98 = vlaneseq
      %v99 = vand.u32 %v98, 127
      %v100 = vstv %s74
      %v101 = vadd.s32 %v100, %v99
      %vm102 = vcmp.eq.s32.totalorder %v97, %v101
      %v103 = vsel %vm102, 0.0, %v88
      %v104 = vsel %vm102, 0.0, %v93
      %v105 = vld [vmem:[#allocation5] sm:$0x1]
      %v106 = vadd.f32 %v103, %v104
      %vm107 = vcmask 64512
      %v108 = vsel %vm107, %v106, 0.0
      %109 = vadd.xlane.f32.xlu0 %v108
      %v110 = vpop.xlane.xlu0 %109
      %v111 = vrot.slane %v110, 4
      %v112 = vadd.f32 %v110, %v111
      %v113 = vrot.slane %v112, 2
      %v114 = vadd.f32 %v112, %v113
      %v115 = vrot.slane %v114, 1
      %v116 = vadd.f32 %v114, %v115
      %s117 = vtos %v116
      %v118 = vstv %s117
      %v119 = vadd.f32 %v105, %v118
      %vm120 = vcmask 0
      %121 = vst.msk [vmem:[#allocation5] sm:$0x1] %vm120, %v119
    $region29: #{tpu_custom_call.1} parent=1 // pred_fallthru
      _
    %p122 = pneg %p79
    // Predicated region
    $region30: #{tpu_custom_call.1} parent=1 // pred_check
      _
    $region31: #{tpu_custom_call.1} parent=1 // pred_check_branch
      %124 = sbr.rel (%p79) target = $region33
    $region32: #{tpu_custom_call.1} parent=1 // pred_region
      %126 = vset.pattern.permute.xlu0 0
      %127 = vperm.xlu0 %126, %v41
      %v128 = vpop.permute.xlu0 %127
      %v130 = vsub.f32 %v68, %v128
      %v131 = vmax.f32 %v130, 0.0
      %v133 = vperm.slane %v42, 0
      %v135 = vsub.f32 %v68, %v133
      %v136 = vmax.f32 %v135, 0.0
      %v137 = vld [vmem:[#allocation5] sm:$0x1]
      %v138 = vadd.f32 %v131, %v136
      %vm139 = vcmask 64512
      %v140 = vsel %vm139, %v138, 0.0
      %141 = vadd.xlane.f32.xlu0 %v140
      %v142 = vpop.xlane.xlu0 %141
      %v143 = vrot.slane %v142, 4
      %v144 = vadd.f32 %v142, %v143
      %v145 = vrot.slane %v144, 2
      %v146 = vadd.f32 %v144, %v145
      %v147 = vrot.slane %v146, 1
      %v148 = vadd.f32 %v146, %v147
      %s149 = vtos %v148
      %v150 = vstv %s149
      %v151 = vadd.f32 %v137, %v150
      %vm152 = vcmask 0
      %153 = vst.msk [vmem:[#allocation5] sm:$0x1] %vm152, %v151
    $region33: #{tpu_custom_call.1} parent=1 // pred_fallthru
      _
    // Predicated region
    $region34: #{tpu_custom_call.1} parent=1 // pred_check
      _
    $region35: #{tpu_custom_call.1} parent=1 // pred_check_branch
      %155 = sbr.rel (0) target = $region37
    $region36: #{tpu_custom_call.1} parent=1 // pred_region
      %157 = vsyncadd [#allocation4], 0
      %s159 = sshll.u32 [#allocation5], 4
      %s160 = int_to_ptr.vmem [resolvable:$true] %s159
      %s161 = sshll.u32 %s4, 4
      %s162 = int_to_ptr.hbm [resolvable:$true] %s161
      %164 = dma.vmem_to_hbm [thread:$0]  %s160, 128, %s162, [#allocation4]
    $region37: #{tpu_custom_call.1} parent=1 // pred_fallthru
      _
    // Predicated region
    $region38: #{tpu_custom_call.1} parent=1 // pred_check
      _
    $region39: #{tpu_custom_call.1} parent=1 // pred_check_branch
      %166 = sbr.rel (0) target = $region41
    $region40: #{tpu_custom_call.1} parent=1 // pred_region
      %168 = dma.done [#allocation4], 128
    $region41: #{tpu_custom_call.1} parent=1 // pred_fallthru
      _
    %169 = vsyncpa [#allocation3], 1
    %170 = vsyncpa [#allocation4], 1

</llo_original>
